<compile_context>
chip_gen: v5e
topology: v5e:2x2
jax: 0.10.0
libtpu: 0.0.40
codegen_flags: <defaults>
</compile_context>

<pallas_src>
import functools

import jax
import jax.numpy as jnp
from jax import lax
from jax.experimental import pallas as pl
from jax.experimental.pallas import tpu as pltpu

KERNEL_SIZE = 11   # torchmetrics default
SIGMA = 1.5        # torchmetrics default
K1 = 0.01
K2 = 0.03


def _round_up(x, m):
    return ((x + m - 1) // m) * m


def _cdiv(a, b):
    return -(-a // b)


def _gaussian_1d(kernel_size=KERNEL_SIZE, sigma=SIGMA):
    # matches torchmetrics _gaussian(): positions (1-k)/2 .. (k-1)/2, normalized
    dist = jnp.arange((1 - kernel_size) / 2.0, (1 + kernel_size) / 2.0, 1.0,
                      dtype=jnp.float32)
    g = jnp.exp(-((dist / sigma) ** 2) / 2.0)
    return g / jnp.sum(g)


def _band_matrix(size, kernel_1d):
    """Banded matrix M (out, size) with M[o, o+j] = kernel_1d[j] (valid conv)."""
    k = kernel_1d.shape[0]
    out = size - k + 1
    rows = jnp.arange(out)[:, None]
    cols = jnp.arange(size)[None, :]
    j = cols - rows
    valid = (j >= 0) & (j < k)
    return jnp.where(valid, kernel_1d[jnp.clip(j, 0, k - 1)], 0.0).astype(jnp.float32)


def _loss_kernel(x_ref, y_ref, a_ref, bt_ref, o_ref,
                 *, bsz, h, ho, wo, hop, wop, c1, c2):
    f32 = jnp.float32
    a = a_ref[...]                      # (Hop, H) row gaussian, zero rows >= Ho
    bt = bt_ref[...]                    # (W, Wop) col gaussian, zero cols >= Wo

    # padded-region mask (padded mu/sigma are 0 -> ssim == 1 there; exclude it)
    row = lax.broadcasted_iota(jnp.int32, (hop, wop), 0)
    col = lax.broadcasted_iota(jnp.int32, (hop, wop), 1)
    valid = (row < ho) & (col < wo)

    def body(b, carry):
        mae_acc, ssim_acc = carry
        xb = x_ref[b].astype(f32)       # (H, W)
        yb = y_ref[b].astype(f32)

        mae_acc = mae_acc + jnp.sum(jnp.abs(xb - yb))

        # column (lane) gaussian fused across the 5 channels: one matmul
        stacked = jnp.concatenate([xb, yb, xb * xb, yb * yb, xb * yb], axis=0)
        s1 = jnp.dot(stacked, bt, preferred_element_type=f32)        # (5H, Wop)
        # row (sublane) gaussian: dense A reused as LHS for each channel
        mu_x = jnp.dot(a, s1[0 * h:1 * h], preferred_element_type=f32)
        mu_y = jnp.dot(a, s1[1 * h:2 * h], preferred_element_type=f32)
        m_xx = jnp.dot(a, s1[2 * h:3 * h], preferred_element_type=f32)
        m_yy = jnp.dot(a, s1[3 * h:4 * h], preferred_element_type=f32)
        m_xy = jnp.dot(a, s1[4 * h:5 * h], preferred_element_type=f32)

        mu_x2 = mu_x * mu_x
        mu_y2 = mu_y * mu_y
        mu_xy = mu_x * mu_y
        sig_x = m_xx - mu_x2
        sig_y = m_yy - mu_y2
        sig_xy = m_xy - mu_xy

        num = (2.0 * mu_xy + c1) * (2.0 * sig_xy + c2)
        den = (mu_x2 + mu_y2 + c1) * (sig_x + sig_y + c2)
        ssim_acc = ssim_acc + jnp.sum(jnp.where(valid, num / den, 0.0))
        return mae_acc, ssim_acc

    zero = jnp.zeros((), f32)
    mae_part, ssim_part = lax.fori_loop(0, bsz, body, (zero, zero))

    # lane-dense partial tile: row 0 carries the MAE partial, row 1 the SSIM one
    orow = lax.broadcasted_iota(jnp.int32, (8, 128), 0)
    tile = jnp.where(orow == 0, mae_part,
                     jnp.where(orow == 1, ssim_part, 0.0)).astype(f32)
    o_ref[0] = tile


def _vmem_capacity_bytes():
    """Per-TensorCore VMEM capacity; conservative fallback if unavailable."""
    try:
        info = pltpu.get_tpu_info()
        cap = int(getattr(info, "vmem_capacity_bytes", 0) or 0)
        if cap > 0:
            return cap
    except Exception:
        pass
    return 64 * 1024 * 1024   # v7x per-core VMEM (smallest of the three gens)


def _step_vmem_bytes(bsz, h, w, hop, wop, itemsize):
    """Estimated per-grid-step VMEM working set."""
    blocks = 2 * 2 * bsz * h * w * itemsize            # x, y blocks, double-buffered
    consts = 2 * (hop * h + w * wop) * 4               # A, B^T (2-deep pipeline)
    out = 2 * 8 * 128 * 4                              # output tile, double-buffered
    per_img = (8 * h * w + 5 * h * wop + 18 * hop * wop) * 4   # one image's f32 temps
    return blocks + consts + out + per_img


def _choose_batch(nc, h, w, hop, wop, itemsize, budget):
    """Largest batch-per-step (<= min(nc, 256)) whose working set fits `budget`."""
    best = 1
    for b in range(1, min(nc, 256) + 1):
        if _step_vmem_bytes(b, h, w, hop, wop, itemsize) <= budget:
            best = b
    return best


def w_mae_ssim_loss(pred, target, data_range=1.0, w_mae=0.5, w_ssim=0.5):
    """pred/target: (N, C, H, W) float arrays. Returns scalar loss (f32)."""
    n, c, h, w = pred.shape
    ho, wo = h - KERNEL_SIZE + 1, w - KERNEL_SIZE + 1
    assert ho > 0 and wo > 0, "spatial dims must be >= 11 for SSIM window"
    hop = _round_up(ho, 8)      # 8-aligned sublane rows
    wop = _round_up(wo, 128)    # lane-dense columns

    g = _gaussian_1d()
    # dense row gaussian, rows padded to a multiple of 8 (zero rows are masked)
    a_pad = jnp.zeros((hop, h), jnp.float32).at[:ho].set(_band_matrix(h, g))
    # lane-padded column gaussian (zero cols beyond Wo are masked in-kernel)
    bt = jnp.zeros((w, wop), jnp.float32).at[:, :wo].set(_band_matrix(w, g).T)

    nc = n * c
    # keep native dtype (bf16 inputs -> half the HBM read traffic); cast in-kernel
    xs = pred.reshape(nc, h, w)
    ys = target.reshape(nc, h, w)
    itemsize = jnp.dtype(pred.dtype).itemsize

    cap_bytes = _vmem_capacity_bytes()
    budget = int(0.45 * cap_bytes)
    bsz = _choose_batch(nc, h, w, hop, wop, itemsize, budget)
    num_steps = _cdiv(nc, bsz)
    # prefer an even step count (>= 2) so both v7x TensorCores stay busy
    if num_steps > 1 and num_steps % 2 == 1:
        alt_bsz = _cdiv(nc, num_steps + 1)
        if alt_bsz >= 1 and _cdiv(nc, alt_bsz) % 2 == 0:
            bsz = alt_bsz
            num_steps = _cdiv(nc, bsz)

    pad = num_steps * bsz - nc
    if pad:
        # zero padding is exact: |0-0| adds nothing to MAE and a zero-vs-zero
        # window gives ssim == 1.0 exactly, subtracted analytically below.
        zpad_x = jnp.zeros((pad, h, w), xs.dtype)
        zpad_y = jnp.zeros((pad, h, w), ys.dtype)
        xs = jnp.concatenate([xs, zpad_x], axis=0)
        ys = jnp.concatenate([ys, zpad_y], axis=0)
    nc_pad = num_steps * bsz

    needed = _step_vmem_bytes(bsz, h, w, hop, wop, itemsize)
    vmem_limit = int(min(max(2 * needed, 24 * 1024 * 1024), 0.92 * cap_bytes))

    c1 = float((K1 * data_range) ** 2)
    c2 = float((K2 * data_range) ** 2)

    kern = functools.partial(
        _loss_kernel, bsz=bsz, h=h, ho=ho, wo=wo, hop=hop, wop=wop, c1=c1, c2=c2)

    flops_per_img = (2 * 5 * h * w * wop          # stage-1 (column gaussian) matmul
                     + 2 * 5 * hop * h * wop      # stage-2 (row gaussian) matmuls
                     + 40 * hop * wop + 4 * h * w)
    cost = pl.CostEstimate(
        flops=nc_pad * flops_per_img,
        transcendentals=0,
        bytes_accessed=(2 * nc_pad * h * w * itemsize
                        + (hop * h + w * wop) * 4
                        + num_steps * 8 * 128 * 4))

    partials = pl.pallas_call(
        kern,
        out_shape=jax.ShapeDtypeStruct((num_steps, 8, 128), jnp.float32),
        grid_spec=pltpu.PrefetchScalarGridSpec(
            num_scalar_prefetch=0,
            grid=(num_steps,),
            in_specs=[
                pl.BlockSpec((bsz, h, w), lambda i: (i, 0, 0)),   # pred slices
                pl.BlockSpec((bsz, h, w), lambda i: (i, 0, 0)),   # target slices
                pl.BlockSpec((hop, h), lambda i: (0, 0)),         # row gaussian A
                pl.BlockSpec((w, wop), lambda i: (0, 0)),         # padded B^T
            ],
            out_specs=pl.BlockSpec((1, 8, 128), lambda i: (i, 0, 0)),
        ),
        compiler_params=pltpu.CompilerParams(
            dimension_semantics=("parallel",),    # no cross-step state -> megacore OK
            vmem_limit_bytes=vmem_limit),
        cost_estimate=cost,
    )(xs, ys, a_pad, bt)

    # tiny final reduction in plain JAX (keeps the grid axis parallel)
    # NOTE: averaging global sums matches torchmetrics because every image in a
    # single 4-D batch shares the same spatial size.
    mae = jnp.sum(partials[:, 0, 0]) / (nc * h * w)
    ssim = (jnp.sum(partials[:, 1, 0]) - pad * float(ho * wo)) / (nc * ho * wo)
    return w_mae * mae + w_ssim * (1.0 - ssim)


def _reference(pred, target, data_range=1.0, w_mae=0.5, w_ssim=0.5):
    """Pure-JAX reference mirroring torchmetrics SSIM + L1 (for checking)."""
    n, c, h, w = pred.shape
    g = _gaussian_1d()
    a = _band_matrix(h, g)
    b = _band_matrix(w, g)

    def conv(img):
        return jnp.einsum('oh,nchw,pw->ncop', a, img, b)

    mu_x = conv(pred)
    mu_y = conv(target)
    sx = conv(pred * pred) - mu_x ** 2
    sy = conv(target * target) - mu_y ** 2
    sxy = conv(pred * target) - mu_x * mu_y
    c1 = (K1 * data_range) ** 2
    c2 = (K2 * data_range) ** 2
    ssim_map = ((2 * mu_x * mu_y + c1) * (2 * sxy + c2)) / \
               ((mu_x ** 2 + mu_y ** 2 + c1) * (sx + sy + c2))
    ssim = ssim_map.reshape(n, -1).mean(-1).mean()
    mae = jnp.mean(jnp.abs(pred - target))
    return w_mae * mae + w_ssim * (1.0 - ssim)


if __name__ == "__main__":
    key = jax.random.PRNGKey(0)
    ka, kb = jax.random.split(key)
    N, C, H, W = 2, 4, 16, 16
    pred = jax.random.uniform(ka, (N, C, H, W), dtype=jnp.float32)
    target = jax.random.uniform(kb, (N, C, H, W), dtype=jnp.float32)

    loss = w_mae_ssim_loss(pred, target, data_range=1.0, w_mae=0.5, w_ssim=0.5)
    loss = jax.block_until_ready(loss)

    ref = _reference(pred, target, data_range=1.0, w_mae=0.5, w_ssim=0.5)
    assert abs(float(loss) - float(ref)) < 1e-4, (float(loss), float(ref))
    print("KERNEL_OK")
</pallas_src>

<mosaic_0001>
module attributes {stable_mosaic.version = 11 : i64} {
  func.func @_loss_kernel(%arg0: i32, %arg1: memref<8x16x16xf32, #tpu.memory_space<vmem>>, %arg2: memref<8x16x16xf32, #tpu.memory_space<vmem>>, %arg3: memref<8x16xf32, #tpu.memory_space<vmem>>, %arg4: memref<16x128xf32, #tpu.memory_space<vmem>>, %arg5: memref<1x8x128xf32, #tpu.memory_space<vmem>>) attributes {dimension_semantics = [#tpu.dimension_semantics<parallel>], iteration_bounds = array<i64: 1>, scalar_prefetch = 0 : i64, scratch_operands = 0 : i64, tpu.core_type = #tpu.core_type<tc>, window_params = [{transform_indices = @transform_0, window_bounds = array<i64: 8, 16, 16>}, {transform_indices = @transform_1, window_bounds = array<i64: 8, 16, 16>}, {pipeline_mode = #tpu.pipeline_mode<synchronous>, transform_indices = @transform_2, window_bounds = array<i64: 8, 16>}, {pipeline_mode = #tpu.pipeline_mode<synchronous>, transform_indices = @transform_3, window_bounds = array<i64: 16, 128>}, {transform_indices = @transform_4, window_bounds = array<i64: 1, 8, 128>}]} {
    %c0 = arith.constant 0 : index
    %c0_0 = arith.constant 0 : index
    %0 = vector.load %arg3[%c0, %c0_0] : memref<8x16xf32, #tpu.memory_space<vmem>>, vector<8x16xf32>
    %c0_1 = arith.constant 0 : index
    %c0_2 = arith.constant 0 : index
    %1 = vector.load %arg4[%c0_1, %c0_2] : memref<16x128xf32, #tpu.memory_space<vmem>>, vector<16x128xf32>
    %2 = tpu.iota {dimensions = array<i32: 0>} : vector<8x128xi32>
    %3 = tpu.iota {dimensions = array<i32: 1>} : vector<8x128xi32>
    %c6_i32 = arith.constant 6 : i32
    %4 = vector.broadcast %c6_i32 : i32 to vector<8x128xi32>
    %5 = arith.cmpi slt, %2, %4 : vector<8x128xi32>
    %c6_i32_3 = arith.constant 6 : i32
    %6 = vector.broadcast %c6_i32_3 : i32 to vector<8x128xi32>
    %7 = arith.cmpi slt, %3, %6 : vector<8x128xi32>
    %8 = arith.andi %5, %7 : vector<8x128xi1>
    %cst = arith.constant 0.000000e+00 : f32
    %cst_4 = arith.constant 0.000000e+00 : f32
    %c0_i32 = arith.constant 0 : i32
    %c8_i32 = arith.constant 8 : i32
    %9 = arith.addi %c0_i32, %c8_i32 : i32
    %c1_i32 = arith.constant 1 : i32
    %10:2 = scf.for %arg6 = %c0_i32 to %9 step %c1_i32 iter_args(%arg7 = %cst, %arg8 = %cst_4) -> (f32, f32)  : i32 {
      %24 = arith.index_cast %arg6 : i32 to index
      %c0_12 = arith.constant 0 : index
      %c0_13 = arith.constant 0 : index
      %25 = vector.load %arg1[%24, %c0_12, %c0_13] : memref<8x16x16xf32, #tpu.memory_space<vmem>>, vector<1x16x16xf32>
      %26 = vector.shape_cast %25 : vector<1x16x16xf32> to vector<16x16xf32>
      %27 = arith.index_cast %arg6 : i32 to index
      %c0_14 = arith.constant 0 : index
      %c0_15 = arith.constant 0 : index
      %28 = vector.load %arg2[%27, %c0_14, %c0_15] : memref<8x16x16xf32, #tpu.memory_space<vmem>>, vector<1x16x16xf32>
      %29 = vector.shape_cast %28 : vector<1x16x16xf32> to vector<16x16xf32>
      %30 = arith.subf %26, %29 : vector<16x16xf32>
      %31 = math.absf %30 : vector<16x16xf32>
      %32 = vector.shape_cast %31 : vector<16x16xf32> to vector<1x16x16xf32>
      %cst_16 = arith.constant dense<0.000000e+00> : vector<1xf32>
      %33 = vector.multi_reduction <add>, %32, %cst_16 [1, 2] : vector<1x16x16xf32> to vector<1xf32>
      %34 = vector.shape_cast %33 : vector<1xf32> to vector<1x1x1xf32>
      %35 = vector.extract %34[0, 0, 0] : f32 from vector<1x1x1xf32>
      %36 = arith.addf %arg7, %35 : f32
      %37 = arith.mulf %26, %26 : vector<16x16xf32>
      %38 = arith.mulf %29, %29 : vector<16x16xf32>
      %39 = arith.mulf %26, %29 : vector<16x16xf32>
      %40 = tpu.concatenate %26, %29, %37, %38, %39 in 0 : vector<16x16xf32>, vector<16x16xf32>, vector<16x16xf32>, vector<16x16xf32>, vector<16x16xf32> -> vector<80x16xf32>
      %cst_17 = arith.constant dense<0.000000e+00> : vector<80x128xf32>
      %41 = tpu.matmul %40, %1, %cst_17 {dimension_numbers = #tpu.dot_dimension_numbers<[1], [0], [0], [1], [0, 0, 1, 1], [], []>} : vector<80x16xf32>, vector<16x128xf32>, vector<80x128xf32> -> vector<80x128xf32>
      %42 = vector.extract_strided_slice %41 {offsets = [0, 0], sizes = [16, 128], strides = [1, 1]} : vector<80x128xf32> to vector<16x128xf32>
      %cst_18 = arith.constant dense<0.000000e+00> : vector<8x128xf32>
      %43 = tpu.matmul %0, %42, %cst_18 {dimension_numbers = #tpu.dot_dimension_numbers<[1], [0], [0], [1], [0, 0, 1, 1], [], []>} : vector<8x16xf32>, vector<16x128xf32>, vector<8x128xf32> -> vector<8x128xf32>
      %44 = vector.extract_strided_slice %41 {offsets = [16, 0], sizes = [16, 128], strides = [1, 1]} : vector<80x128xf32> to vector<16x128xf32>
      %cst_19 = arith.constant dense<0.000000e+00> : vector<8x128xf32>
      %45 = tpu.matmul %0, %44, %cst_19 {dimension_numbers = #tpu.dot_dimension_numbers<[1], [0], [0], [1], [0, 0, 1, 1], [], []>} : vector<8x16xf32>, vector<16x128xf32>, vector<8x128xf32> -> vector<8x128xf32>
      %46 = vector.extract_strided_slice %41 {offsets = [32, 0], sizes = [16, 128], strides = [1, 1]} : vector<80x128xf32> to vector<16x128xf32>
      %cst_20 = arith.constant dense<0.000000e+00> : vector<8x128xf32>
      %47 = tpu.matmul %0, %46, %cst_20 {dimension_numbers = #tpu.dot_dimension_numbers<[1], [0], [0], [1], [0, 0, 1, 1], [], []>} : vector<8x16xf32>, vector<16x128xf32>, vector<8x128xf32> -> vector<8x128xf32>
      %48 = vector.extract_strided_slice %41 {offsets = [48, 0], sizes = [16, 128], strides = [1, 1]} : vector<80x128xf32> to vector<16x128xf32>
      %cst_21 = arith.constant dense<0.000000e+00> : vector<8x128xf32>
      %49 = tpu.matmul %0, %48, %cst_21 {dimension_numbers = #tpu.dot_dimension_numbers<[1], [0], [0], [1], [0, 0, 1, 1], [], []>} : vector<8x16xf32>, vector<16x128xf32>, vector<8x128xf32> -> vector<8x128xf32>
      %50 = vector.extract_strided_slice %41 {offsets = [64, 0], sizes = [16, 128], strides = [1, 1]} : vector<80x128xf32> to vector<16x128xf32>
      %cst_22 = arith.constant dense<0.000000e+00> : vector<8x128xf32>
      %51 = tpu.matmul %0, %50, %cst_22 {dimension_numbers = #tpu.dot_dimension_numbers<[1], [0], [0], [1], [0, 0, 1, 1], [], []>} : vector<8x16xf32>, vector<16x128xf32>, vector<8x128xf32> -> vector<8x128xf32>
      %52 = arith.mulf %43, %43 : vector<8x128xf32>
      %53 = arith.mulf %45, %45 : vector<8x128xf32>
      %54 = arith.mulf %43, %45 : vector<8x128xf32>
      %55 = arith.subf %47, %52 : vector<8x128xf32>
      %56 = arith.subf %49, %53 : vector<8x128xf32>
      %57 = arith.subf %51, %54 : vector<8x128xf32>
      %cst_23 = arith.constant 2.000000e+00 : f32
      %58 = vector.broadcast %cst_23 : f32 to vector<8x128xf32>
      %59 = arith.mulf %58, %54 : vector<8x128xf32>
      %cst_24 = arith.constant 9.99999974E-5 : f32
      %60 = vector.broadcast %cst_24 : f32 to vector<8x128xf32>
      %61 = arith.addf %59, %60 : vector<8x128xf32>
      %cst_25 = arith.constant 2.000000e+00 : f32
      %62 = vector.broadcast %cst_25 : f32 to vector<8x128xf32>
      %63 = arith.mulf %62, %57 : vector<8x128xf32>
      %cst_26 = arith.constant 8.99999984E-4 : f32
      %64 = vector.broadcast %cst_26 : f32 to vector<8x128xf32>
      %65 = arith.addf %63, %64 : vector<8x128xf32>
      %66 = arith.mulf %61, %65 : vector<8x128xf32>
      %67 = arith.addf %52, %53 : vector<8x128xf32>
      %cst_27 = arith.constant 9.99999974E-5 : f32
      %68 = vector.broadcast %cst_27 : f32 to vector<8x128xf32>
      %69 = arith.addf %67, %68 : vector<8x128xf32>
      %70 = arith.addf %55, %56 : vector<8x128xf32>
      %cst_28 = arith.constant 8.99999984E-4 : f32
      %71 = vector.broadcast %cst_28 : f32 to vector<8x128xf32>
      %72 = arith.addf %70, %71 : vector<8x128xf32>
      %73 = arith.mulf %69, %72 : vector<8x128xf32>
      %74 = arith.divf %66, %73 : vector<8x128xf32>
      %cst_29 = arith.constant 0.000000e+00 : f32
      %75 = vector.broadcast %cst_29 : f32 to vector<8x128xf32>
      %76 = arith.select %8, %74, %75 : vector<8x128xi1>, vector<8x128xf32>
      %77 = vector.shape_cast %76 : vector<8x128xf32> to vector<1x8x128xf32>
      %cst_30 = arith.constant dense<0.000000e+00> : vector<1xf32>
      %78 = vector.multi_reduction <add>, %77, %cst_30 [1, 2] : vector<1x8x128xf32> to vector<1xf32>
      %79 = vector.shape_cast %78 : vector<1xf32> to vector<1x1x1xf32>
      %80 = vector.extract %79[0, 0, 0] : f32 from vector<1x1x1xf32>
      %81 = arith.addf %arg8, %80 : f32
      scf.yield %36, %81 : f32, f32
    }
    %c8_i32_5 = arith.constant 8 : i32
    %11 = tpu.iota {dimensions = array<i32: 0>} : vector<8x128xi32>
    %c0_i32_6 = arith.constant 0 : i32
    %12 = vector.broadcast %c0_i32_6 : i32 to vector<8x128xi32>
    %13 = arith.cmpi eq, %11, %12 : vector<8x128xi32>
    %c1_i32_7 = arith.constant 1 : i32
    %14 = vector.broadcast %c1_i32_7 : i32 to vector<8x128xi32>
    %15 = arith.cmpi eq, %11, %14 : vector<8x128xi32>
    %cst_8 = arith.constant 0.000000e+00 : f32
    %16 = vector.broadcast %10#1 : f32 to vector<8x128xf32>
    %17 = vector.broadcast %cst_8 : f32 to vector<8x128xf32>
    %18 = arith.select %15, %16, %17 : vector<8x128xi1>, vector<8x128xf32>
    %19 = vector.broadcast %10#0 : f32 to vector<8x128xf32>
    %20 = arith.select %13, %19, %18 : vector<8x128xi1>, vector<8x128xf32>
    %c0_9 = arith.constant 0 : index
    %c0_10 = arith.constant 0 : index
    %c0_11 = arith.constant 0 : index
    %21 = vector.load %arg5[%c0_9, %c0_10, %c0_11] : memref<1x8x128xf32, #tpu.memory_space<vmem>>, vector<1x8x128xf32>
    %22 = vector.shape_cast %21 : vector<1x8x128xf32> to vector<8x128xf32>
    %23 = vector.shape_cast %20 : vector<8x128xf32> to vector<1x8x128xf32>
    tpu.vector_store %arg5[%c0_9, %c0_10, %c0_11], %23 {strides = array<i32>} : memref<1x8x128xf32, #tpu.memory_space<vmem>>, vector<1x8x128xf32>,
    return
  }
  func.func @transform_0(%arg0: i32) -> (i32, i32, i32) {
    %c0_i32 = arith.constant 0 : i32
    %c0_i32_0 = arith.constant 0 : i32
    %c0_i32_1 = arith.constant 0 : i32
    return %arg0, %c0_i32, %c0_i32_0 : i32, i32, i32
  }
  func.func @transform_1(%arg0: i32) -> (i32, i32, i32) {
    %c0_i32 = arith.constant 0 : i32
    %c0_i32_0 = arith.constant 0 : i32
    %c0_i32_1 = arith.constant 0 : i32
    return %arg0, %c0_i32, %c0_i32_0 : i32, i32, i32
  }
  func.func @transform_2(%arg0: i32) -> (i32, i32) {
    %c0_i32 = arith.constant 0 : i32
    %c0_i32_0 = arith.constant 0 : i32
    %c0_i32_1 = arith.constant 0 : i32
    return %c0_i32, %c0_i32_0 : i32, i32
  }
  func.func @transform_3(%arg0: i32) -> (i32, i32) {
    %c0_i32 = arith.constant 0 : i32
    %c0_i32_0 = arith.constant 0 : i32
    %c0_i32_1 = arith.constant 0 : i32
    return %c0_i32, %c0_i32_0 : i32, i32
  }
  func.func @transform_4(%arg0: i32) -> (i32, i32, i32) {
    %c0_i32 = arith.constant 0 : i32
    %c0_i32_0 = arith.constant 0 : i32
    %c0_i32_1 = arith.constant 0 : i32
    return %arg0, %c0_i32, %c0_i32_0 : i32, i32, i32
  }
}

</mosaic_0001>

<llo_original>
// kernel: tpu_custom_call.1
$region0: #{tpu_custom_call.1}
  #allocation0 [shape = 'u32[]', space=smem, size = 0x4, offset = 0x4, fixed_abs, tag = 'smem constant byte address 0x4 - core index']
  #allocation1 [shape = 'u32[72,128]{1,0:T(1,128)}', space=vmem, size = 0x9000, scoped, tag = 'internal scratch']
  %s0 = inlined_call_operand.hbm [shape: f32[8,16,16], index: 0, kind: input, shape index: {}]
  %s1 = inlined_call_operand.hbm [shape: f32[8,16,16], index: 1, kind: input, shape index: {}]
  %s2 = inlined_call_operand.hbm [shape: f32[8,16], index: 2, kind: input, shape index: {}]
  %s3 = inlined_call_operand.hbm [shape: f32[16,128], index: 3, kind: input, shape index: {}]
  %s4 = inlined_call_operand.hbm [shape: f32[1,8,128], index: 4, kind: output, shape index: {}]
  %s5 = sld [smem:[#allocation0]]
  $region49: #{tpu_custom_call.1} parent=0
    _
  %s7 = ssub.s32 1, %s5
  %s8 = scalar_select 0, %s7, %s5
  $region1: #{tpu_custom_call.1} parent=0
    #allocation2 [shape = 'u8[65536]{0}', space=vmem, size = 0x10000, scoped, tag = 'input window, operand 0, single buffered']
    #allocation3 [shape = 's32[1]{0}', space=sflag, size = 0x4, scoped, tag = 'scoped memory for tpu_custom_call.1']
    #allocation4 [shape = 's32[1]{0}', space=sflag, size = 0x4, scoped, tag = 'scoped memory for tpu_custom_call.1']
    #allocation5 [shape = 'u8[65536]{0}', space=vmem, size = 0x10000, scoped, tag = 'input window, operand 1, single buffered']
    #allocation6 [shape = 's32[1]{0}', space=sflag, size = 0x4, scoped, tag = 'scoped memory for tpu_custom_call.1']
    #allocation7 [shape = 'u8[4096]{0}', space=vmem, size = 0x1000, scoped, tag = 'input window, operand 2, single buffered']
    #allocation8 [shape = 'u8[8192]{0}', space=vmem, size = 0x2000, scoped, tag = 'input window, operand 3, single buffered']
    #allocation9 [shape = 's32[1]{0}', space=sflag, size = 0x4, scoped, tag = 'scoped memory for tpu_custom_call.1']
    #allocation10 [shape = 'u8[4096]{0}', space=vmem, size = 0x1000, scoped, tag = 'output window, operand 0, single buffered']
    %9 = vsyncpa [#allocation3], 0
    %10 = vsyncpa [#allocation6], 0
    %11 = vsyncpa [#allocation9], 0
    %12 = vsyncpa [#allocation4], 0
    // Predicated region
    $region2: #{tpu_custom_call.1} parent=1 // pred_check
      _
    $region3: #{tpu_custom_call.1} parent=1 // pred_check_branch
      %14 = sbr.rel (0) target = $region5
    $region4: #{tpu_custom_call.1} parent=1 // pred_region
      %16 = vsyncadd [#allocation3], 0
      %s17 = sshll.u32 %s0, 4
      %s18 = int_to_ptr.hbm [resolvable:$true] %s17
      %s19 = sshll.u32 [#allocation2], 4
      %s20 = int_to_ptr.vmem [resolvable:$true] %s19
      %25 = dma.hbm_to_vmem [thread:$0]  %s18, 2048, %s20, [#allocation3], 128, 128, 8
    $region5: #{tpu_custom_call.1} parent=1 // pred_fallthru
      _
    // Predicated region
    $region6: #{tpu_custom_call.1} parent=1 // pred_check
      _
    $region7: #{tpu_custom_call.1} parent=1 // pred_check_branch
      %27 = sbr.rel (0) target = $region9
    $region8: #{tpu_custom_call.1} parent=1 // pred_region
      %29 = vsyncadd [#allocation6], 0
      %s30 = sshll.u32 %s1, 4
      %s31 = int_to_ptr.hbm [resolvable:$true] %s30
      %s32 = sshll.u32 [#allocation5], 4
      %s33 = int_to_ptr.vmem [resolvable:$true] %s32
      %38 = dma.hbm_to_vmem [thread:$0]  %s31, 2048, %s33, [#allocation6], 128, 128, 8
    $region9: #{tpu_custom_call.1} parent=1 // pred_fallthru
      _
    // Predicated region
    $region10: #{tpu_custom_call.1} parent=1 // pred_check
      _
    $region11: #{tpu_custom_call.1} parent=1 // pred_check_branch
      %40 = sbr.rel (0) target = $region13
    $region12: #{tpu_custom_call.1} parent=1 // pred_region
      %42 = vsyncadd [#allocation6], 0
      %s44 = sshll.u32 %s2, 4
      %s45 = int_to_ptr.hbm [resolvable:$true] %s44
      %s46 = sshll.u32 [#allocation7], 4
      %s47 = int_to_ptr.vmem [resolvable:$true] %s46
      %49 = dma.hbm_to_vmem [thread:$0]  %s45, 128, %s47, [#allocation6]
    $region13: #{tpu_custom_call.1} parent=1 // pred_fallthru
      _
    // Predicated region
    $region14: #{tpu_custom_call.1} parent=1 // pred_check
      _
    $region15: #{tpu_custom_call.1} parent=1 // pred_check_branch
      %51 = sbr.rel (0) target = $region17
    $region16: #{tpu_custom_call.1} parent=1 // pred_region
      %53 = vsyncadd [#allocation9], 0
      %s54 = sshll.u32 %s3, 4
      %s55 = int_to_ptr.hbm [resolvable:$true] %s54
      %s56 = sshll.u32 [#allocation8], 4
      %s57 = int_to_ptr.vmem [resolvable:$true] %s56
      %62 = dma.hbm_to_vmem [thread:$0]  %s55, 256, %s57, [#allocation9], 128, 128, 8
    $region17: #{tpu_custom_call.1} parent=1 // pred_fallthru
      _
    // Predicated region
    $region18: #{tpu_custom_call.1} parent=1 // pred_check
      _
    $region19: #{tpu_custom_call.1} parent=1 // pred_check_branch
      %64 = sbr.rel (0) target = $region21
    $region20: #{tpu_custom_call.1} parent=1 // pred_region
      %66 = dma.done [#allocation3], 2048
    $region21: #{tpu_custom_call.1} parent=1 // pred_fallthru
      _
    // Predicated region
    $region22: #{tpu_custom_call.1} parent=1 // pred_check
      _
    $region23: #{tpu_custom_call.1} parent=1 // pred_check_branch
      %68 = sbr.rel (0) target = $region25
    $region24: #{tpu_custom_call.1} parent=1 // pred_region
      %70 = dma.done [#allocation6], 2048
    $region25: #{tpu_custom_call.1} parent=1 // pred_fallthru
      _
    // Predicated region
    $region26: #{tpu_custom_call.1} parent=1 // pred_check
      _
    $region27: #{tpu_custom_call.1} parent=1 // pred_check_branch
      %72 = sbr.rel (0) target = $region29
    $region28: #{tpu_custom_call.1} parent=1 // pred_region
      %74 = dma.done [#allocation6], 128
    $region29: #{tpu_custom_call.1} parent=1 // pred_fallthru
      _
    // Predicated region
    $region30: #{tpu_custom_call.1} parent=1 // pred_check
      _
    $region31: #{tpu_custom_call.1} parent=1 // pred_check_branch
      %76 = sbr.rel (0) target = $region33
    $region32: #{tpu_custom_call.1} parent=1 // pred_region
      %78 = dma.done [#allocation9], 256
    $region33: #{tpu_custom_call.1} parent=1 // pred_fallthru
      _
    %v79 = vld [vmem:[#allocation7] sm:$0xff]
    %v80 = vld [vmem:[#allocation8] sm:$0xff]
    %v81 = vld [vmem:[#allocation8 + $0x8] sm:$0xff]
    %v82 = vlaneseq
    %v83 = vshrl.u32 %v82, 7
    %v84 = vlaneseq
    %v85 = vand.u32 %v84, 127
    %vm86 = vcmp.lt.s32.totalorder %v83, 6
    %vm87 = vcmp.lt.s32.totalorder %v85, 6
    %vm88 = vmand %vm86, %vm87
    loop: start=0, step=1, limit=8
    $region34: #{tpu_custom_call.1} parent=1 // loop_pre_header
      _
    $region35: #{tpu_custom_call.1} parent=1 // loop_header
      %s90 = sphi 0, %s94
      %p91 = scmp.ge.s32.totalorder %s90, 8
      %s95 = sphi 0.0, %s121
      %s96 = sphi 0.0, %s349
    $region36: #{tpu_custom_call.1} parent=1 // loop_header_branch
      %93 = sbr.rel (%p91) target = $region40
    $region37: #{tpu_custom_call.1} parent=1 // loop_body
      %s97 = smul.u32 %s90, 16
      %s98 = scalar_lea.vmem [#allocation2], %s97
      %v99 = vld [vmem:[%s98] sm:$0xff]
      %v100 = vld [vmem:[%s98 + $0x8] sm:$0xff]
      %s101 = scalar_lea.vmem [#allocation5], %s97
      %v102 = vld [vmem:[%s101] sm:$0xff]
      %v103 = vld [vmem:[%s101 + $0x8] sm:$0xff]
      %v104 = vsub.f32 %v99, %v102
      %v105 = vsub.f32 %v100, %v103
      %v106 = vand.u32 2147483647, %v104
      %v107 = vand.u32 2147483647, %v105
      %vm108 = vcmask 130048
      %v109 = vsel %vm108, %v106, 0.0
      %v110 = vsel %vm108, %v107, 0.0
      %v111 = vadd.f32 %v109, %v110
      %112 = vadd.xlane.f32.xlu0 %v111
      %v113 = vpop.xlane.xlu0 %112
      %v114 = vrot.slane %v113, 4
      %v115 = vadd.f32 %v113, %v114
      %v116 = vrot.slane %v115, 2
      %v117 = vadd.f32 %v115, %v116
      %v118 = vrot.slane %v117, 1
      %v119 = vadd.f32 %v117, %v118
      %s120 = vtos %v119
      %s121 = sadd.f32 %s95, %s120
      %v122 = vmul.f32 %v99, %v99
      %v123 = vmul.f32 %v100, %v100
      %v124 = vmul.f32 %v102, %v102
      %v125 = vmul.f32 %v103, %v103
      %v126 = vmul.f32 %v99, %v102
      %v127 = vmul.f32 %v100, %v103
      %v129 = vsel %vm108, %v99, 0
      %v132 = vsel %vm108, %v100, 0
      %v135 = vsel %vm108, %v102, 0
      %v138 = vsel %vm108, %v103, 0
      %v141 = vsel %vm108, %v122, 0
      %v144 = vsel %vm108, %v123, 0
      %v147 = vsel %vm108, %v124, 0
      %v150 = vsel %vm108, %v125, 0
      %v153 = vsel %vm108, %v126, 0
      %v156 = vsel %vm108, %v127, 0
      %158 = vmatpush.msra.mxu0 0.0
      %159 = vmatpush.msra.mxu0 0.0
      %160 = vmatpush.msra.mxu0 0.0
      %161 = vmatpush.msra.mxu0 0.0
      %162 = vmatpush.msra.mxu0 0.0
      %163 = vmatpush.msra.mxu0 0.0
      %164 = vmatpush.msra.mxu0 0.0
      %165 = vmatpush.msra.mxu0 0.0
      %166 = vmatpush.msra.mxu0 0.0
      %167 = vmatpush.msra.mxu0 0.0
      %168 = vmatpush.msra.mxu0 0.0
      %169 = vmatpush.msra.mxu0 0.0
      %170 = vmatpush.msra.mxu0 0.0
      %171 = vmatpush.msra.mxu0 0.0
      %172 = vmatpush.msra.mxu0 %v81
      %173 = vmatpush.msra.mxu0 %v80
      %174 = vmatmul.f32.gmra.mxu0 %v129
      %v175 = vpop.f32.mrf.mxu0
      %v176 = vadd.f32 0.0, %v175
      %177 = vmatmul.f32.gmra.mxu0 %v132
      %v178 = vpop.f32.mrf.mxu0
      %v179 = vadd.f32 0.0, %v178
      %180 = vmatmul.f32.gmra.mxu0 %v135
      %v181 = vpop.f32.mrf.mxu0
      %v182 = vadd.f32 0.0, %v181
      %183 = vmatmul.f32.gmra.mxu0 %v138
      %v184 = vpop.f32.mrf.mxu0
      %v185 = vadd.f32 0.0, %v184
      %186 = vmatmul.f32.gmra.mxu0 %v141
      %v187 = vpop.f32.mrf.mxu0
      %v188 = vadd.f32 0.0, %v187
      %189 = vmatmul.f32.gmra.mxu0 %v144
      %v190 = vpop.f32.mrf.mxu0
      %v191 = vadd.f32 0.0, %v190
      %192 = vmatmul.f32.gmra.mxu0 %v147
      %v193 = vpop.f32.mrf.mxu0
      %v194 = vadd.f32 0.0, %v193
      %195 = vmatmul.f32.gmra.mxu0 %v150
      %v196 = vpop.f32.mrf.mxu0
      %v197 = vadd.f32 0.0, %v196
      %198 = vmatmul.f32.gmra.mxu0 %v153
      %v199 = vpop.f32.mrf.mxu0
      %v200 = vadd.f32 0.0, %v199
      %201 = vmatmul.f32.gmra.mxu0 %v156
      %v202 = vpop.f32.mrf.mxu0
      %v203 = vadd.f32 0.0, %v202
      %204 = vdwg.mxu0
      %v206 = vsel %vm108, %v79, 0
      %208 = vmatpush.msra.mxu0 0.0
      %209 = vmatpush.msra.mxu0 0.0
      %210 = vmatpush.msra.mxu0 0.0
      %211 = vmatpush.msra.mxu0 0.0
      %212 = vmatpush.msra.mxu0 0.0
      %213 = vmatpush.msra.mxu0 0.0
      %214 = vmatpush.msra.mxu0 0.0
      %215 = vmatpush.msra.mxu0 0.0
      %216 = vmatpush.msra.mxu0 0.0
      %217 = vmatpush.msra.mxu0 0.0
      %218 = vmatpush.msra.mxu0 0.0
      %219 = vmatpush.msra.mxu0 0.0
      %220 = vmatpush.msra.mxu0 0.0
      %221 = vmatpush.msra.mxu0 0.0
      %222 = vmatpush.msra.mxu0 %v179
      %223 = vmatpush.msra.mxu0 %v176
      %224 = vmatmul.f32.gmra.mxu0 %v206
      %v225 = vpop.f32.mrf.mxu0
      %v226 = vadd.f32 0.0, %v225
      %227 = vdwg.mxu0
      %228 = vmatpush.msra.mxu0 0.0
      %229 = vmatpush.msra.mxu0 0.0
      %230 = vmatpush.msra.mxu0 0.0
      %231 = vmatpush.msra.mxu0 0.0
      %232 = vmatpush.msra.mxu0 0.0
      %233 = vmatpush.msra.mxu0 0.0
      %234 = vmatpush.msra.mxu0 0.0
      %235 = vmatpush.msra.mxu0 0.0
      %236 = vmatpush.msra.mxu0 0.0
      %237 = vmatpush.msra.mxu0 0.0
      %238 = vmatpush.msra.mxu0 0.0
      %239 = vmatpush.msra.mxu0 0.0
      %240 = vmatpush.msra.mxu0 0.0
      %241 = vmatpush.msra.mxu0 0.0
      %242 = vmatpush.msra.mxu0 %v185
      %243 = vmatpush.msra.mxu0 %v182
      %244 = vmatmul.f32.gmra.mxu0 %v206
      %v245 = vpop.f32.mrf.mxu0
      %v246 = vadd.f32 0.0, %v245
      %247 = vdwg.mxu0
      %248 = vmatpush.msra.mxu0 0.0
      %249 = vmatpush.msra.mxu0 0.0
      %250 = vmatpush.msra.mxu0 0.0
      %251 = vmatpush.msra.mxu0 0.0
      %252 = vmatpush.msra.mxu0 0.0
      %253 = vmatpush.msra.mxu0 0.0
      %254 = vmatpush.msra.mxu0 0.0
      %255 = vmatpush.msra.mxu0 0.0
      %256 = vmatpush.msra.mxu0 0.0
      %257 = vmatpush.msra.mxu0 0.0
      %258 = vmatpush.msra.mxu0 0.0
      %259 = vmatpush.msra.mxu0 0.0
      %260 = vmatpush.msra.mxu0 0.0
      %261 = vmatpush.msra.mxu0 0.0
      %262 = vmatpush.msra.mxu0 %v191
      %263 = vmatpush.msra.mxu0 %v188
      %264 = vmatmul.f32.gmra.mxu0 %v206
      %v265 = vpop.f32.mrf.mxu0
      %v266 = vadd.f32 0.0, %v265
      %267 = vdwg.mxu0
      %268 = vmatpush.msra.mxu0 0.0
      %269 = vmatpush.msra.mxu0 0.0
      %270 = vmatpush.msra.mxu0 0.0
      %271 = vmatpush.msra.mxu0 0.0
      %272 = vmatpush.msra.mxu0 0.0
      %273 = vmatpush.msra.mxu0 0.0
      %274 = vmatpush.msra.mxu0 0.0
      %275 = vmatpush.msra.mxu0 0.0
      %276 = vmatpush.msra.mxu0 0.0
      %277 = vmatpush.msra.mxu0 0.0
      %278 = vmatpush.msra.mxu0 0.0
      %279 = vmatpush.msra.mxu0 0.0
      %280 = vmatpush.msra.mxu0 0.0
      %281 = vmatpush.msra.mxu0 0.0
      %282 = vmatpush.msra.mxu0 %v197
      %283 = vmatpush.msra.mxu0 %v194
      %284 = vmatmul.f32.gmra.mxu0 %v206
      %v285 = vpop.f32.mrf.mxu0
      %v286 = vadd.f32 0.0, %v285
      %287 = vdwg.mxu0
      %288 = vmatpush.msra.mxu0 0.0
      %289 = vmatpush.msra.mxu0 0.0
      %290 = vmatpush.msra.mxu0 0.0
      %291 = vmatpush.msra.mxu0 0.0
      %292 = vmatpush.msra.mxu0 0.0
      %293 = vmatpush.msra.mxu0 0.0
      %294 = vmatpush.msra.mxu0 0.0
      %295 = vmatpush.msra.mxu0 0.0
      %296 = vmatpush.msra.mxu0 0.0
      %297 = vmatpush.msra.mxu0 0.0
      %298 = vmatpush.msra.mxu0 0.0
      %299 = vmatpush.msra.mxu0 0.0
      %300 = vmatpush.msra.mxu0 0.0
      %301 = vmatpush.msra.mxu0 0.0
      %302 = vmatpush.msra.mxu0 %v203
      %303 = vmatpush.msra.mxu0 %v200
      %304 = vmatmul.f32.gmra.mxu0 %v206
      %v305 = vpop.f32.mrf.mxu0
      %v306 = vadd.f32 0.0, %v305
      %307 = vdwg.mxu0
      %v308 = vmul.f32 %v226, %v226
      %v309 = vmul.f32 %v246, %v246
      %v310 = vmul.f32 %v226, %v246
      %v311 = vsub.f32 %v266, %v308
      %v312 = vsub.f32 %v286, %v309
      %v313 = vsub.f32 %v306, %v310
      %v314 = vmul.f32 %v310, 2.0
      %v315 = vadd.f32 %v314, 0.0001
      %v316 = vmul.f32 %v313, 2.0
      %v317 = vadd.f32 %v316, 0.0009
      %v318 = vmul.f32 %v315, %v317
      %v319 = vadd.f32 %v308, %v309
      %v320 = vadd.f32 %v319, 0.0001
      %v321 = vadd.f32 %v311, %v312
      %v322 = vadd.f32 %v321, 0.0009
      %v323 = vmul.f32 %v320, %v322
      %v324 = vrcp.pop %v323
      %v325 = vmul.f32 %v323, %v324
      %v326 = vsub.f32 1.0, %v325
      %v327 = vmul.f32 %v324, %v326
      %v328 = vadd.f32 %v324, %v327
      %vm329 = vweird.f32 %v323
      %vm330 = vweird.f32 %v324
      %vm331 = vmor %vm329, %vm330
      %v332 = vsel %vm331, %v324, %v328
      %v333 = vand.u32 2147483647, %v323
      %vm334 = vcmp.eq.f32.partialorder %v333, 8.507059e+37
      %v335 = vand.u32 %v323, 2147483648
      %v336 = vor.u32 1.1754944e-38, %v335
      %v337 = vsel %vm334, %v336, %v332
      %v338 = vmul.f32 %v318, %v337
      %v339 = vsel %vm88, %v338, 0.0
      %340 = vadd.xlane.f32.xlu0 %v339
      %v341 = vpop.xlane.xlu0 %340
      %v342 = vrot.slane %v341, 4
      %v343 = vadd.f32 %v341, %v342
      %v344 = vrot.slane %v343, 2
      %v345 = vadd.f32 %v343, %v344
      %v346 = vrot.slane %v345, 1
      %v347 = vadd.f32 %v345, %v346
      %s348 = vtos %v347
      %s349 = sadd.f32 %s96, %s348
    $region38: #{tpu_custom_call.1} parent=1 // loop_footer
      %s94 = sadd.s32 1, %s90
    $region39: #{tpu_custom_call.1} parent=1 // loop_footer_branch
      %89 = sbr.rel target = $region35
    $region40: #{tpu_custom_call.1} parent=1 // loop_exit
      _
    %vm350 = vcmp.eq.s32.totalorder %v83, 0
    %vm351 = vcmp.eq.s32.totalorder %v83, 1
    %v352 = vstv %s96
    %v353 = vsel %vm351, %v352, 0.0
    %v354 = vstv %s95
    %v355 = vsel %vm350, %v354, %v353
    %356 = vst [vmem:[#allocation10] sm:$0xff] %v355
    // Predicated region
    $region41: #{tpu_custom_call.1} parent=1 // pred_check
      _
    $region42: #{tpu_custom_call.1} parent=1 // pred_check_branch
      %358 = sbr.rel (0) target = $region44
    $region43: #{tpu_custom_call.1} parent=1 // pred_region
      %360 = vsyncadd [#allocation4], 0
      %s362 = sshll.u32 [#allocation10], 4
      %s363 = int_to_ptr.vmem [resolvable:$true] %s362
      %s364 = sshll.u32 %s4, 4
      %s365 = int_to_ptr.hbm [resolvable:$true] %s364
      %367 = dma.vmem_to_hbm [thread:$0]  %s363, 128, %s365, [#allocation4]
    $region44: #{tpu_custom_call.1} parent=1 // pred_fallthru
      _
    // Predicated region
    $region45: #{tpu_custom_call.1} parent=1 // pred_check
      _
    $region46: #{tpu_custom_call.1} parent=1 // pred_check_branch
      %369 = sbr.rel (0) target = $region48
    $region47: #{tpu_custom_call.1} parent=1 // pred_region
      %371 = dma.done [#allocation4], 128
    $region48: #{tpu_custom_call.1} parent=1 // pred_fallthru
      _
    %372 = vsyncpa [#allocation3], 1
    %373 = vsyncpa [#allocation6], 1
    %374 = vsyncpa [#allocation9], 1
    %375 = vsyncpa [#allocation4], 1

</llo_original>
